<compile_context>
chip_gen: v7x
topology: tpu7x:2x2x1
jax: 0.10.0
libtpu: 0.0.40
codegen_flags: <defaults>
</compile_context>

<pallas_src>
import jax
import jax.numpy as jnp
from jax import lax
from jax.experimental import pallas as pl
from jax.experimental.pallas import tpu as pltpu


_DN_T = (((1,), (1,)), ((), ()))  # contract last dim of lhs with last dim of rhs (== x @ W.T)


def _vmem_spec():
    # grid=() single block, whole array resident in VMEM.
    return pl.BlockSpec(memory_space=pltpu.MemorySpace.VMEM)


# -----------------------------------------------------------------------------
# Kernel 1: GraphSequential.forward()  ->  per-node weight matrix W (N, OUT)
# Runs once (all inputs are frozen parameters); kept in f32 for accuracy.
# (Default matmul precision is fine at the 1e-2 tolerance used downstream; pass
#  precision=lax.Precision.HIGHEST here if bit-accurate W is ever required.)
# -----------------------------------------------------------------------------
def graph_sequential_kernel(emb_ref, corr_ref, w1_ref, b1_ref, w2_ref, b2_ref,
                            w_out_ref):
    emb = emb_ref[...]                                                    # (N, E)
    corr = corr_ref[...]                                                  # (N, N)

    # GraphLinear 1: propagate then linear (weight consumed as (out, in); no .T)
    prop1 = jnp.dot(corr, emb, preferred_element_type=jnp.float32)        # (N, E)
    h = lax.dot_general(prop1, w1_ref[...], _DN_T,
                        preferred_element_type=jnp.float32)               # (N, H)
    h = h + b1_ref[...]                                                   # (1, H) bcast
    h = jnp.maximum(h, 0.2 * h)                                           # LeakyReLU(0.2), 1 vmax

    # GraphLinear 2: propagate then linear
    prop2 = jnp.dot(corr, h, preferred_element_type=jnp.float32)          # (N, H)
    w = lax.dot_general(prop2, w2_ref[...], _DN_T,
                        preferred_element_type=jnp.float32)               # (N, OUT)
    w_out_ref[...] = w + b2_ref[...]                                      # (1, OUT) bcast


# -----------------------------------------------------------------------------
# Kernel 2: hot-path classifier  logits = x @ W.T + bias
# W arrives ALREADY bf16 (pre-cast once outside the kernel); only the per-call
# activation x is cast in-kernel.  f32 accumulate, f32 bias epilogue.
# -----------------------------------------------------------------------------
def classifier_kernel(x_ref, w_bf_ref, bias_ref, out_ref):
    x_bf = x_ref[...].astype(jnp.bfloat16)                                # (B, OUT)
    logits = lax.dot_general(x_bf, w_bf_ref[...], _DN_T,
                             preferred_element_type=jnp.float32)          # (B, N)
    out_ref[...] = logits + bias_ref[...]                                 # f32 bias add


# -----------------------------------------------------------------------------
# Kernel 3: fully fused uncached forward (one pallas_call, one launch, W never
# round-trips through HBM).  Graph branch in f32, classifier matmul in bf16.
# -----------------------------------------------------------------------------
def gcn_fused_kernel(x_ref, emb_ref, corr_ref, w1_ref, b1_ref, w2_ref, b2_ref,
                     bias_ref, out_ref):
    corr = corr_ref[...]                                                  # (N, N)

    prop1 = jnp.dot(corr, emb_ref[...], preferred_element_type=jnp.float32)
    h = lax.dot_general(prop1, w1_ref[...], _DN_T,
                        preferred_element_type=jnp.float32) + b1_ref[...]
    h = jnp.maximum(h, 0.2 * h)                                           # LeakyReLU(0.2)

    prop2 = jnp.dot(corr, h, preferred_element_type=jnp.float32)
    w = lax.dot_general(prop2, w2_ref[...], _DN_T,
                        preferred_element_type=jnp.float32) + b2_ref[...] # (N, OUT) f32

    logits = lax.dot_general(x_ref[...].astype(jnp.bfloat16),
                             w.astype(jnp.bfloat16), _DN_T,
                             preferred_element_type=jnp.float32)          # (B, N)
    out_ref[...] = logits + bias_ref[...]


# -----------------------------------------------------------------------------
# Wrappers
# -----------------------------------------------------------------------------
def graph_sequential_forward(emb, corr, w1, b1, w2, b2):
    """Pallas implementation of GraphSequential.forward(): W = sequential(embedding)."""
    N = emb.shape[0]
    out_features = w2.shape[0]
    args = (emb, corr, w1, b1, w2, b2)
    return pl.pallas_call(
        graph_sequential_kernel,
        out_shape=jax.ShapeDtypeStruct((N, out_features), jnp.float32),
        in_specs=[_vmem_spec() for _ in args],
        out_specs=_vmem_spec(),
    )(*args)


def classifier_forward(x, w_bf16, bias):
    """Per-forward hot path: logits = x @ W.T + bias, with W cached in bf16."""
    B = x.shape[0]
    N = w_bf16.shape[0]
    args = (x, w_bf16, bias)
    return pl.pallas_call(
        classifier_kernel,
        out_shape=jax.ShapeDtypeStruct((B, N), jnp.float32),
        in_specs=[_vmem_spec() for _ in args],
        out_specs=_vmem_spec(),
    )(*args)


def gcn_forward_fused(x, emb, corr, w1, b1, w2, b2, bias):
    """Uncached path: single fused pallas_call (graph branch + classifier)."""
    B = x.shape[0]
    N = emb.shape[0]
    args = (x, emb, corr, w1, b1, w2, b2, bias)
    return pl.pallas_call(
        gcn_fused_kernel,
        out_shape=jax.ShapeDtypeStruct((B, N), jnp.float32),
        in_specs=[_vmem_spec() for _ in args],
        out_specs=_vmem_spec(),
    )(*args)


def gcn_reference(x, emb, corr, w1, b1, w2, b2, bias):
    prop1 = corr @ emb
    h = prop1 @ w1.T + b1
    h = jnp.where(h >= 0.0, h, 0.2 * h)
    prop2 = corr @ h
    w = prop2 @ w2.T + b2
    return x @ w.T + bias


if __name__ == "__main__":
    # Small shapes consistent with the module:
    #   N nodes = 8, embedding dim E = 32, out_features = 64 (H = 32), batch = 2
    N, E, OUT, B = 8, 32, 64, 2
    H = OUT // 2

    key = jax.random.PRNGKey(0)
    k_emb, k_corr, k_w1, k_b1, k_w2, k_b2, k_x = jax.random.split(key, 7)

    emb = jax.random.normal(k_emb, (N, E), jnp.float32)
    # Symmetric, row-normalized adjacency-like matrix
    a = jnp.abs(jax.random.normal(k_corr, (N, N), jnp.float32))
    a = 0.5 * (a + a.T) + jnp.eye(N, dtype=jnp.float32)
    corr = a / jnp.sum(a, axis=-1, keepdims=True)

    # GraphLinear parameters (nn.Linear layout: weight (out, in); biases as (1, out) rows)
    w1 = jax.random.normal(k_w1, (H, E), jnp.float32) * 0.1
    b1 = jax.random.normal(k_b1, (1, H), jnp.float32) * 0.1
    w2 = jax.random.normal(k_w2, (OUT, H), jnp.float32) * 0.1
    b2 = jax.random.normal(k_b2, (1, OUT), jnp.float32) * 0.1

    # GCN classifier bias over the N nodes (zeros, as in the torch init)
    bias = jnp.zeros((1, N), jnp.float32)

    # Input x for the downstream classifier: (B, out_features)
    x = jax.random.normal(k_x, (B, OUT), jnp.float32)

    ref = gcn_reference(x, emb, corr, w1, b1, w2, b2, bias)

    # --- Cached hot path: compute frozen W once, cache it PRE-CAST to bf16 ---------
    w_nodes = jax.block_until_ready(
        graph_sequential_forward(emb, corr, w1, b1, w2, b2))
    assert w_nodes.shape == (N, OUT)
    w_nodes_bf16 = w_nodes.astype(jnp.bfloat16)        # one-time cast, outside the kernel

    out_cached = jax.block_until_ready(classifier_forward(x, w_nodes_bf16, bias))
    assert out_cached.shape == (B, N)
    assert jnp.allclose(out_cached, ref, rtol=1e-2, atol=1e-2), "cached path mismatch"

    # --- Fused uncached path: one pallas_call end-to-end ---------------------------
    out_fused = jax.block_until_ready(
        gcn_forward_fused(x, emb, corr, w1, b1, w2, b2, bias))
    assert out_fused.shape == (B, N)
    assert jnp.allclose(out_fused, ref, rtol=1e-2, atol=1e-2), "fused path mismatch"

    print("KERNEL_OK")
</pallas_src>

<mosaic_0001>
module attributes {stable_mosaic.version = 11 : i64} {
  func.func @graph_sequential_kernel(%arg0: memref<8x32xf32, #tpu.memory_space<vmem>>, %arg1: memref<8x8xf32, #tpu.memory_space<vmem>>, %arg2: memref<32x32xf32, #tpu.memory_space<vmem>>, %arg3: memref<1x32xf32, #tpu.memory_space<vmem>>, %arg4: memref<64x32xf32, #tpu.memory_space<vmem>>, %arg5: memref<1x64xf32, #tpu.memory_space<vmem>>, %arg6: memref<8x64xf32, #tpu.memory_space<vmem>>) attributes {dimension_semantics = [], scalar_prefetch = 0 : i64, scratch_operands = 0 : i64, tpu.core_type = #tpu.core_type<tc>} {
    %c0 = arith.constant 0 : index
    %c0_0 = arith.constant 0 : index
    %0 = vector.load %arg0[%c0, %c0_0] : memref<8x32xf32, #tpu.memory_space<vmem>>, vector<8x32xf32>
    %c0_1 = arith.constant 0 : index
    %c0_2 = arith.constant 0 : index
    %1 = vector.load %arg1[%c0_1, %c0_2] : memref<8x8xf32, #tpu.memory_space<vmem>>, vector<8x8xf32>
    %cst = arith.constant dense<0.000000e+00> : vector<8x32xf32>
    %2 = tpu.matmul %1, %0, %cst {dimension_numbers = #tpu.dot_dimension_numbers<[1], [0], [0], [1], [0, 0, 1, 1], [], []>} : vector<8x8xf32>, vector<8x32xf32>, vector<8x32xf32> -> vector<8x32xf32>
    %c0_3 = arith.constant 0 : index
    %c0_4 = arith.constant 0 : index
    %3 = vector.load %arg2[%c0_3, %c0_4] : memref<32x32xf32, #tpu.memory_space<vmem>>, vector<32x32xf32>
    %cst_5 = arith.constant dense<0.000000e+00> : vector<8x32xf32>
    %4 = tpu.matmul %2, %3, %cst_5 {dimension_numbers = #tpu.dot_dimension_numbers<[1], [1], [0], [0], [0, 0, 1, 0], [], []>} : vector<8x32xf32>, vector<32x32xf32>, vector<8x32xf32> -> vector<8x32xf32>
    %c0_6 = arith.constant 0 : index
    %c0_7 = arith.constant 0 : index
    %5 = vector.load %arg3[%c0_6, %c0_7] : memref<1x32xf32, #tpu.memory_space<vmem>>, vector<1x32xf32>
    %6 = vector.broadcast %5 : vector<1x32xf32> to vector<8x32xf32>
    %7 = arith.addf %4, %6 : vector<8x32xf32>
    %cst_8 = arith.constant 2.000000e-01 : f32
    %8 = vector.broadcast %cst_8 : f32 to vector<8x32xf32>
    %9 = arith.mulf %8, %7 : vector<8x32xf32>
    %10 = arith.maximumf %7, %9 : vector<8x32xf32>
    %cst_9 = arith.constant dense<0.000000e+00> : vector<8x32xf32>
    %11 = tpu.matmul %1, %10, %cst_9 {dimension_numbers = #tpu.dot_dimension_numbers<[1], [0], [0], [1], [0, 0, 1, 1], [], []>} : vector<8x8xf32>, vector<8x32xf32>, vector<8x32xf32> -> vector<8x32xf32>
    %c0_10 = arith.constant 0 : index
    %c0_11 = arith.constant 0 : index
    %12 = vector.load %arg4[%c0_10, %c0_11] : memref<64x32xf32, #tpu.memory_space<vmem>>, vector<64x32xf32>
    %cst_12 = arith.constant dense<0.000000e+00> : vector<8x64xf32>
    %13 = tpu.matmul %11, %12, %cst_12 {dimension_numbers = #tpu.dot_dimension_numbers<[1], [1], [0], [0], [0, 0, 1, 0], [], []>} : vector<8x32xf32>, vector<64x32xf32>, vector<8x64xf32> -> vector<8x64xf32>
    %c0_13 = arith.constant 0 : index
    %c0_14 = arith.constant 0 : index
    %14 = vector.load %arg5[%c0_13, %c0_14] : memref<1x64xf32, #tpu.memory_space<vmem>>, vector<1x64xf32>
    %15 = vector.broadcast %14 : vector<1x64xf32> to vector<8x64xf32>
    %16 = arith.addf %13, %15 : vector<8x64xf32>
    %c0_15 = arith.constant 0 : index
    %c0_16 = arith.constant 0 : index
    %17 = vector.load %arg6[%c0_15, %c0_16] : memref<8x64xf32, #tpu.memory_space<vmem>>, vector<8x64xf32>
    tpu.vector_store %arg6[%c0_15, %c0_16], %16 {strides = array<i32>} : memref<8x64xf32, #tpu.memory_space<vmem>>, vector<8x64xf32>,
    return
  }
}

</mosaic_0001>

<llo_original>
// kernel: tpu_custom_call.1
$region0: #{tpu_custom_call.1}
  #allocation0 [shape = 'u32[]', space=smem, size = 0x4, offset = 0x4, fixed_abs, tag = 'smem constant byte address 0x4 - core index']
  #allocation1 [shape = 'u32[144,128]{1,0:T(1,128)}', space=vmem, size = 0x12000, scoped, tag = 'internal scratch']
  %s0 = inlined_call_operand.vmem [shape: f32[8,32], index: 0, kind: input, shape index: {}]
  %s1 = inlined_call_operand.vmem [shape: f32[8,8], index: 1, kind: input, shape index: {}]
  %s2 = inlined_call_operand.vmem [shape: f32[32,32], index: 2, kind: input, shape index: {}]
  %s3 = inlined_call_operand.vmem [shape: f32[1,32], index: 3, kind: input, shape index: {}]
  %s4 = inlined_call_operand.vmem [shape: f32[64,32], index: 4, kind: input, shape index: {}]
  %s5 = inlined_call_operand.vmem [shape: f32[1,64], index: 5, kind: input, shape index: {}]
  %s6 = inlined_call_operand.hbm [shape: f32[8,64], index: 6, kind: output, shape index: {}]
  %s7 = sld [smem:[#allocation0]]
  $region34: #{tpu_custom_call.1} parent=0
    _
  %s9 = ssub.s32 1, %s7
  %s10 = scalar_select 0, %s9, %s7
  $region1: #{tpu_custom_call.1} parent=0
    #allocation2 [shape = 'u8[4096]{0}', space=vmem, size = 0x1000, scoped, tag = 'output window, operand 0, single buffered']
    #allocation3 [shape = 's32[1]{0}', space=sflag, size = 0x4, scoped, tag = 'scoped memory for tpu_custom_call.1']
    %11 = vsyncpa [#allocation3], 0
    // Predicated region
    $region2: #{tpu_custom_call.1} parent=1 // pred_check
      _
    $region3: #{tpu_custom_call.1} parent=1 // pred_check_branch
      %13 = sbr.rel (0) target = $region5
    $region4: #{tpu_custom_call.1} parent=1 // pred_region
      _
    $region5: #{tpu_custom_call.1} parent=1 // pred_fallthru
      _
    // Predicated region
    $region6: #{tpu_custom_call.1} parent=1 // pred_check
      _
    $region7: #{tpu_custom_call.1} parent=1 // pred_check_branch
      %15 = sbr.rel (0) target = $region9
    $region8: #{tpu_custom_call.1} parent=1 // pred_region
      _
    $region9: #{tpu_custom_call.1} parent=1 // pred_fallthru
      _
    // Predicated region
    $region10: #{tpu_custom_call.1} parent=1 // pred_check
      _
    $region11: #{tpu_custom_call.1} parent=1 // pred_check_branch
      %17 = sbr.rel (0) target = $region13
    $region12: #{tpu_custom_call.1} parent=1 // pred_region
      _
    $region13: #{tpu_custom_call.1} parent=1 // pred_fallthru
      _
    // Predicated region
    $region14: #{tpu_custom_call.1} parent=1 // pred_check
      _
    $region15: #{tpu_custom_call.1} parent=1 // pred_check_branch
      %19 = sbr.rel (0) target = $region17
    $region16: #{tpu_custom_call.1} parent=1 // pred_region
      _
    $region17: #{tpu_custom_call.1} parent=1 // pred_fallthru
      _
    // Predicated region
    $region18: #{tpu_custom_call.1} parent=1 // pred_check
      _
    $region19: #{tpu_custom_call.1} parent=1 // pred_check_branch
      %21 = sbr.rel (0) target = $region21
    $region20: #{tpu_custom_call.1} parent=1 // pred_region
      _
    $region21: #{tpu_custom_call.1} parent=1 // pred_fallthru
      _
    // Predicated region
    $region22: #{tpu_custom_call.1} parent=1 // pred_check
      _
    $region23: #{tpu_custom_call.1} parent=1 // pred_check_branch
      %23 = sbr.rel (0) target = $region25
    $region24: #{tpu_custom_call.1} parent=1 // pred_region
      _
    $region25: #{tpu_custom_call.1} parent=1 // pred_fallthru
      _
    %v24 = vld [vmem:[%s0] sm:$0xff]
    %v25 = vld [vmem:[%s1] sm:$0xff]
    %vm26 = vcmask 64512
    %v28 = vsel %vm26, %v25, 0
    %30 = vmatprep.subr.mxu0 0.0
    %31 = vmatpush1.msra.mxu0 %v24
    %32 = vmatprep.subr.mxu0 0.0
    %33 = vmatpush1.msra.mxu0 0.0
    %34 = vmatprep.subr.mxu0 0.0
    %35 = vmatpush1.msra.mxu0 0.0
    %36 = vmatprep.subr.mxu0 0.0
    %37 = vmatpush1.msra.mxu0 0.0
    %38 = vmatprep.subr.mxu0 0.0
    %39 = vmatpush1.msra.mxu0 0.0
    %40 = vmatprep.subr.mxu0 0.0
    %41 = vmatpush1.msra.mxu0 0.0
    %42 = vmatprep.subr.mxu0 0.0
    %43 = vmatpush1.msra.mxu0 0.0
    %44 = vmatprep.subr.mxu0 0.0
    %45 = vmatpush1.msra.mxu0 0.0
    %46 = vmatprep.subr.mxu0 0.0
    %47 = vmatpush1.msra.mxu0 0.0
    %48 = vmatprep.subr.mxu0 0.0
    %49 = vmatpush1.msra.mxu0 0.0
    %50 = vmatprep.subr.mxu0 0.0
    %51 = vmatpush1.msra.mxu0 0.0
    %52 = vmatprep.subr.mxu0 0.0
    %53 = vmatpush1.msra.mxu0 0.0
    %54 = vmatprep.subr.mxu0 0.0
    %55 = vmatpush1.msra.mxu0 0.0
    %56 = vmatprep.subr.mxu0 0.0
    %57 = vmatpush1.msra.mxu0 0.0
    %58 = vmatprep.subr.mxu0 0.0
    %59 = vmatpush1.msra.mxu0 0.0
    %60 = vmatprep.subr.mxu0 0.0
    %61 = vmatpush1.msra.mxu0 0.0
    %62 = vmatprep.subr.mxu0 0.0
    %63 = vmatpush1.msra.mxu0 0.0
    %64 = vmatprep.subr.mxu0 0.0
    %65 = vmatpush1.msra.mxu0 0.0
    %66 = vmatprep.subr.mxu0 0.0
    %67 = vmatpush1.msra.mxu0 0.0
    %68 = vmatprep.subr.mxu0 0.0
    %69 = vmatpush1.msra.mxu0 0.0
    %70 = vmatprep.subr.mxu0 0.0
    %71 = vmatpush1.msra.mxu0 0.0
    %72 = vmatprep.subr.mxu0 0.0
    %73 = vmatpush1.msra.mxu0 0.0
    %74 = vmatprep.subr.mxu0 0.0
    %75 = vmatpush1.msra.mxu0 0.0
    %76 = vmatprep.subr.mxu0 0.0
    %77 = vmatpush1.msra.mxu0 0.0
    %78 = vmatprep.subr.mxu0 0.0
    %79 = vmatpush1.msra.mxu0 0.0
    %80 = vmatprep.subr.mxu0 0.0
    %81 = vmatpush1.msra.mxu0 0.0
    %82 = vmatprep.subr.mxu0 0.0
    %83 = vmatpush1.msra.mxu0 0.0
    %84 = vmatprep.subr.mxu0 0.0
    %85 = vmatpush1.msra.mxu0 0.0
    %86 = vmatprep.subr.mxu0 0.0
    %87 = vmatpush1.msra.mxu0 0.0
    %88 = vmatprep.subr.mxu0 0.0
    %89 = vmatpush1.msra.mxu0 0.0
    %90 = vmatprep.subr.mxu0 0.0
    %91 = vmatpush1.msra.mxu0 0.0
    %92 = vmatprep.subr.mxu0 0.0
    %93 = vmatpush1.msra.mxu0 0.0
    %94 = vmatprep.mubr.f32.mxu0 0.0
    %95 = vmatmul.mubr.f32.gmra.mrb[0].mxu0 %v28
    %v96 = vpop.f32.mrb[0].mxu0
    %v97 = vadd.f32 0.0, %v96
    %v98 = vpop.f32.mrb[0].mxu0
    %99 = vdwg.mxu0
    %v100 = vld [vmem:[%s2] sm:$0xff]
    %v101 = vld [vmem:[%s2 + $0x8] sm:$0xff]
    %v102 = vld [vmem:[%s2 + $0x10] sm:$0xff]
    %v103 = vld [vmem:[%s2 + $0x18] sm:$0xff]
    %v104 = vld [vmem:[%s3] sm:$0x1]
    %v106 = vlaneseq
    %v107 = vshrl.u32 %v106, 7
    %v108 = vsub.s32 0, %v107
    %v109 = vrot.slane %v104, %v108
    %vm111 = vcmask 261120
    %v113 = vsel %vm111, %v97, 0
    %v116 = vsel %vm111, %v100, 0
    %v119 = vsel %vm111, %v101, 0
    %v122 = vsel %vm111, %v102, 0
    %v125 = vsel %vm111, %v103, 0
    %127 = vmatprep.subr.mxu0 0.0
    %128 = vmatpush1.xpose.msra.mxu0 %v116
    %129 = vmatprep.subr.mxu0 0.0
    %130 = vmatpush1.xpose.msra.mxu0 %v119
    %131 = vmatprep.subr.mxu0 0.0
    %132 = vmatpush1.xpose.msra.mxu0 %v122
    %133 = vmatprep.subr.mxu0 0.0
    %134 = vmatpush1.xpose.msra.mxu0 %v125
    %135 = vmatprep.subr.mxu0 0.0
    %136 = vmatpush1.xpose.msra.mxu0 0.0
    %137 = vmatprep.subr.mxu0 0.0
    %138 = vmatpush1.xpose.msra.mxu0 0.0
    %139 = vmatprep.subr.mxu0 0.0
    %140 = vmatpush1.xpose.msra.mxu0 0.0
    %141 = vmatprep.subr.mxu0 0.0
    %142 = vmatpush1.xpose.msra.mxu0 0.0
    %143 = vmatprep.subr.mxu0 0.0
    %144 = vmatpush1.xpose.msra.mxu0 0.0
    %145 = vmatprep.subr.mxu0 0.0
    %146 = vmatpush1.xpose.msra.mxu0 0.0
    %147 = vmatprep.subr.mxu0 0.0
    %148 = vmatpush1.xpose.msra.mxu0 0.0
    %149 = vmatprep.subr.mxu0 0.0
    %150 = vmatpush1.xpose.msra.mxu0 0.0
    %151 = vmatprep.subr.mxu0 0.0
    %152 = vmatpush1.xpose.msra.mxu0 0.0
    %153 = vmatprep.subr.mxu0 0.0
    %154 = vmatpush1.xpose.msra.mxu0 0.0
    %155 = vmatprep.subr.mxu0 0.0
    %156 = vmatpush1.xpose.msra.mxu0 0.0
    %157 = vmatprep.subr.mxu0 0.0
    %158 = vmatpush1.xpose.msra.mxu0 0.0
    %159 = vmatprep.subr.mxu0 0.0
    %160 = vmatpush1.xpose.msra.mxu0 0.0
    %161 = vmatprep.subr.mxu0 0.0
    %162 = vmatpush1.xpose.msra.mxu0 0.0
    %163 = vmatprep.subr.mxu0 0.0
    %164 = vmatpush1.xpose.msra.mxu0 0.0
    %165 = vmatprep.subr.mxu0 0.0
    %166 = vmatpush1.xpose.msra.mxu0 0.0
    %167 = vmatprep.subr.mxu0 0.0
    %168 = vmatpush1.xpose.msra.mxu0 0.0
    %169 = vmatprep.subr.mxu0 0.0
    %170 = vmatpush1.xpose.msra.mxu0 0.0
    %171 = vmatprep.subr.mxu0 0.0
    %172 = vmatpush1.xpose.msra.mxu0 0.0
    %173 = vmatprep.subr.mxu0 0.0
    %174 = vmatpush1.xpose.msra.mxu0 0.0
    %175 = vmatprep.subr.mxu0 0.0
    %176 = vmatpush1.xpose.msra.mxu0 0.0
    %177 = vmatprep.subr.mxu0 0.0
    %178 = vmatpush1.xpose.msra.mxu0 0.0
    %179 = vmatprep.subr.mxu0 0.0
    %180 = vmatpush1.xpose.msra.mxu0 0.0
    %181 = vmatprep.subr.mxu0 0.0
    %182 = vmatpush1.xpose.msra.mxu0 0.0
    %183 = vmatprep.subr.mxu0 0.0
    %184 = vmatpush1.xpose.msra.mxu0 0.0
    %185 = vmatprep.subr.mxu0 0.0
    %186 = vmatpush1.xpose.msra.mxu0 0.0
    %187 = vmatprep.subr.mxu0 0.0
    %188 = vmatpush1.xpose.msra.mxu0 0.0
    %189 = vmatprep.subr.mxu0 0.0
    %190 = vmatpush1.xpose.msra.mxu0 0.0
    %191 = vmatprep.mubr.f32.mxu0 0.0
    %192 = vmatmul.mubr.f32.gmra.mrb[0].mxu0 %v113
    %v193 = vpop.f32.mrb[0].mxu0
    %v194 = vadd.f32 %v109, %v193
    %v195 = vpop.f32.mrb[0].mxu0
    %196 = vdwg.mxu0
    %v197 = vmul.f32 %v194, 0.2
    %v198 = vmax.f32 %v194, %v197
    %199 = vmatprep.subr.mxu0 0.0
    %200 = vmatpush1.msra.mxu0 %v198
    %201 = vmatprep.subr.mxu0 0.0
    %202 = vmatpush1.msra.mxu0 0.0
    %203 = vmatprep.subr.mxu0 0.0
    %204 = vmatpush1.msra.mxu0 0.0
    %205 = vmatprep.subr.mxu0 0.0
    %206 = vmatpush1.msra.mxu0 0.0
    %207 = vmatprep.subr.mxu0 0.0
    %208 = vmatpush1.msra.mxu0 0.0
    %209 = vmatprep.subr.mxu0 0.0
    %210 = vmatpush1.msra.mxu0 0.0
    %211 = vmatprep.subr.mxu0 0.0
    %212 = vmatpush1.msra.mxu0 0.0
    %213 = vmatprep.subr.mxu0 0.0
    %214 = vmatpush1.msra.mxu0 0.0
    %215 = vmatprep.subr.mxu0 0.0
    %216 = vmatpush1.msra.mxu0 0.0
    %217 = vmatprep.subr.mxu0 0.0
    %218 = vmatpush1.msra.mxu0 0.0
    %219 = vmatprep.subr.mxu0 0.0
    %220 = vmatpush1.msra.mxu0 0.0
    %221 = vmatprep.subr.mxu0 0.0
    %222 = vmatpush1.msra.mxu0 0.0
    %223 = vmatprep.subr.mxu0 0.0
    %224 = vmatpush1.msra.mxu0 0.0
    %225 = vmatprep.subr.mxu0 0.0
    %226 = vmatpush1.msra.mxu0 0.0
    %227 = vmatprep.subr.mxu0 0.0
    %228 = vmatpush1.msra.mxu0 0.0
    %229 = vmatprep.subr.mxu0 0.0
    %230 = vmatpush1.msra.mxu0 0.0
    %231 = vmatprep.subr.mxu0 0.0
    %232 = vmatpush1.msra.mxu0 0.0
    %233 = vmatprep.subr.mxu0 0.0
    %234 = vmatpush1.msra.mxu0 0.0
    %235 = vmatprep.subr.mxu0 0.0
    %236 = vmatpush1.msra.mxu0 0.0
    %237 = vmatprep.subr.mxu0 0.0
    %238 = vmatpush1.msra.mxu0 0.0
    %239 = vmatprep.subr.mxu0 0.0
    %240 = vmatpush1.msra.mxu0 0.0
    %241 = vmatprep.subr.mxu0 0.0
    %242 = vmatpush1.msra.mxu0 0.0
    %243 = vmatprep.subr.mxu0 0.0
    %244 = vmatpush1.msra.mxu0 0.0
    %245 = vmatprep.subr.mxu0 0.0
    %246 = vmatpush1.msra.mxu0 0.0
    %247 = vmatprep.subr.mxu0 0.0
    %248 = vmatpush1.msra.mxu0 0.0
    %249 = vmatprep.subr.mxu0 0.0
    %250 = vmatpush1.msra.mxu0 0.0
    %251 = vmatprep.subr.mxu0 0.0
    %252 = vmatpush1.msra.mxu0 0.0
    %253 = vmatprep.subr.mxu0 0.0
    %254 = vmatpush1.msra.mxu0 0.0
    %255 = vmatprep.subr.mxu0 0.0
    %256 = vmatpush1.msra.mxu0 0.0
    %257 = vmatprep.subr.mxu0 0.0
    %258 = vmatpush1.msra.mxu0 0.0
    %259 = vmatprep.subr.mxu0 0.0
    %260 = vmatpush1.msra.mxu0 0.0
    %261 = vmatprep.subr.mxu0 0.0
    %262 = vmatpush1.msra.mxu0 0.0
    %263 = vmatprep.mubr.f32.mxu0 0.0
    %264 = vmatmul.mubr.f32.gmra.mrb[0].mxu0 %v28
    %v265 = vpop.f32.mrb[0].mxu0
    %v266 = vadd.f32 0.0, %v265
    %v267 = vpop.f32.mrb[0].mxu0
    %268 = vdwg.mxu0
    %v269 = vld [vmem:[%s4] sm:$0xff]
    %v270 = vld [vmem:[%s4 + $0x8] sm:$0xff]
    %v271 = vld [vmem:[%s4 + $0x10] sm:$0xff]
    %v272 = vld [vmem:[%s4 + $0x18] sm:$0xff]
    %v273 = vld [vmem:[%s4 + $0x20] sm:$0xff]
    %v274 = vld [vmem:[%s4 + $0x28] sm:$0xff]
    %v275 = vld [vmem:[%s4 + $0x30] sm:$0xff]
    %v276 = vld [vmem:[%s4 + $0x38] sm:$0xff]
    %v277 = vld [vmem:[%s5] sm:$0x1]
    %v279 = vlaneseq
    %v280 = vshrl.u32 %v279, 7
    %v281 = vsub.s32 0, %v280
    %v282 = vrot.slane %v277, %v281
    %v285 = vsel %vm111, %v266, 0
    %v288 = vsel %vm111, %v269, 0
    %v291 = vsel %vm111, %v270, 0
    %v294 = vsel %vm111, %v271, 0
    %v297 = vsel %vm111, %v272, 0
    %v300 = vsel %vm111, %v273, 0
    %v303 = vsel %vm111, %v274, 0
    %v306 = vsel %vm111, %v275, 0
    %v309 = vsel %vm111, %v276, 0
    %311 = vmatprep.subr.mxu0 0.0
    %312 = vmatpush1.xpose.msra.mxu0 %v288
    %313 = vmatprep.subr.mxu0 0.0
    %314 = vmatpush1.xpose.msra.mxu0 %v291
    %315 = vmatprep.subr.mxu0 0.0
    %316 = vmatpush1.xpose.msra.mxu0 %v294
    %317 = vmatprep.subr.mxu0 0.0
    %318 = vmatpush1.xpose.msra.mxu0 %v297
    %319 = vmatprep.subr.mxu0 0.0
    %320 = vmatpush1.xpose.msra.mxu0 %v300
    %321 = vmatprep.subr.mxu0 0.0
    %322 = vmatpush1.xpose.msra.mxu0 %v303
    %323 = vmatprep.subr.mxu0 0.0
    %324 = vmatpush1.xpose.msra.mxu0 %v306
    %325 = vmatprep.subr.mxu0 0.0
    %326 = vmatpush1.xpose.msra.mxu0 %v309
    %327 = vmatprep.subr.mxu0 0.0
    %328 = vmatpush1.xpose.msra.mxu0 0.0
    %329 = vmatprep.subr.mxu0 0.0
    %330 = vmatpush1.xpose.msra.mxu0 0.0
    %331 = vmatprep.subr.mxu0 0.0
    %332 = vmatpush1.xpose.msra.mxu0 0.0
    %333 = vmatprep.subr.mxu0 0.0
    %334 = vmatpush1.xpose.msra.mxu0 0.0
    %335 = vmatprep.subr.mxu0 0.0
    %336 = vmatpush1.xpose.msra.mxu0 0.0
    %337 = vmatprep.subr.mxu0 0.0
    %338 = vmatpush1.xpose.msra.mxu0 0.0
    %339 = vmatprep.subr.mxu0 0.0
    %340 = vmatpush1.xpose.msra.mxu0 0.0
    %341 = vmatprep.subr.mxu0 0.0
    %342 = vmatpush1.xpose.msra.mxu0 0.0
    %343 = vmatprep.subr.mxu0 0.0
    %344 = vmatpush1.xpose.msra.mxu0 0.0
    %345 = vmatprep.subr.mxu0 0.0
    %346 = vmatpush1.xpose.msra.mxu0 0.0
    %347 = vmatprep.subr.mxu0 0.0
    %348 = vmatpush1.xpose.msra.mxu0 0.0
    %349 = vmatprep.subr.mxu0 0.0
    %350 = vmatpush1.xpose.msra.mxu0 0.0
    %351 = vmatprep.subr.mxu0 0.0
    %352 = vmatpush1.xpose.msra.mxu0 0.0
    %353 = vmatprep.subr.mxu0 0.0
    %354 = vmatpush1.xpose.msra.mxu0 0.0
    %355 = vmatprep.subr.mxu0 0.0
    %356 = vmatpush1.xpose.msra.mxu0 0.0
    %357 = vmatprep.subr.mxu0 0.0
    %358 = vmatpush1.xpose.msra.mxu0 0.0
    %359 = vmatprep.subr.mxu0 0.0
    %360 = vmatpush1.xpose.msra.mxu0 0.0
    %361 = vmatprep.subr.mxu0 0.0
    %362 = vmatpush1.xpose.msra.mxu0 0.0
    %363 = vmatprep.subr.mxu0 0.0
    %364 = vmatpush1.xpose.msra.mxu0 0.0
    %365 = vmatprep.subr.mxu0 0.0
    %366 = vmatpush1.xpose.msra.mxu0 0.0
    %367 = vmatprep.subr.mxu0 0.0
    %368 = vmatpush1.xpose.msra.mxu0 0.0
    %369 = vmatprep.subr.mxu0 0.0
    %370 = vmatpush1.xpose.msra.mxu0 0.0
    %371 = vmatprep.subr.mxu0 0.0
    %372 = vmatpush1.xpose.msra.mxu0 0.0
    %373 = vmatprep.subr.mxu0 0.0
    %374 = vmatpush1.xpose.msra.mxu0 0.0
    %375 = vmatprep.mubr.f32.mxu0 0.0
    %376 = vmatmul.mubr.f32.gmra.mrb[0].mxu0 %v285
    %v377 = vpop.f32.mrb[0].mxu0
    %v378 = vadd.f32 %v282, %v377
    %v379 = vpop.f32.mrb[0].mxu0
    %380 = vdwg.mxu0
    %vm381 = vcmask 523264
    %382 = vst.msk [vmem:[#allocation2] sm:$0xff] %vm381, %v378
    // Predicated region
    $region26: #{tpu_custom_call.1} parent=1 // pred_check
      _
    $region27: #{tpu_custom_call.1} parent=1 // pred_check_branch
      %384 = sbr.rel (0) target = $region29
    $region28: #{tpu_custom_call.1} parent=1 // pred_region
      %s386 = ssub.s32 128, 128
      %387 = vsyncadd [#allocation3], %s386
      %s389 = sshll.u32 [#allocation2], 4
      %s390 = int_to_ptr.vmem [resolvable:$true] %s389
      %392 = dma.vmem_to_hbm [thread:$0]  %s390, 128, %s6, [#allocation3]
    $region29: #{tpu_custom_call.1} parent=1 // pred_fallthru
      _
    // Predicated region
    $region30: #{tpu_custom_call.1} parent=1 // pred_check
      _
    $region31: #{tpu_custom_call.1} parent=1 // pred_check_branch
      %394 = sbr.rel (0) target = $region33
    $region32: #{tpu_custom_call.1} parent=1 // pred_region
      %395 = dma.done [#allocation3], 128
    $region33: #{tpu_custom_call.1} parent=1 // pred_fallthru
      _
    %396 = vsyncpa [#allocation3], 1

</llo_original>
